<compile_context>
chip_gen: v7x
topology: tpu7x:2x2x1
jax: 0.10.0
libtpu: 0.0.40
codegen_flags: <defaults>
</compile_context>

<pallas_src>
import functools

import jax
import jax.numpy as jnp
from jax import lax
from jax.experimental import pallas as pl
from jax.experimental.pallas import tpu as pltpu


# --------------------------------------------------------------------------
# Fused kernel, one (batch, pixel-tile) per grid step.
#   x_ref  : (Cin, TP)          input pixels, TP = pixel tile (lane axis)
#   w1_ref : (4*Cmid, Cin)      row = (2*di+dj)*Cmid + cm
#   b1_ref : (4*Cmid, 1)
#   w2_ref : (4*Cout, Cmid)     row = (2*di2+dj2)*Cout + co   (shared by all dd)
#   b2_ref : (4*Cout, 1)
#   o_ref  : (4, 4*Cout, TP)    o[dd, s, p], lane-dense stores
# --------------------------------------------------------------------------
def _fused_decoder_kernel(x_ref, w1_ref, b1_ref, w2_ref, b2_ref, o_ref):
    x = x_ref[...]            # (Cin, TP)  f32
    w1 = w1_ref[...]          # (4*Cmid, Cin)
    w2 = w2_ref[...]          # (4*Cout, Cmid)
    b2 = b2_ref[...]          # (4*Cout, 1)
    cin = x.shape[0]
    cmid = w2.shape[1]

    # ---- Layer 1 + ReLU: unrolled VPU broadcast-FMAs (pixels stay in lanes).
    h = b1_ref[...]                                     # (4*Cmid, 1)
    for ci in range(cin):
        h = h + w1[:, ci:ci + 1] * x[ci:ci + 1, :]      # -> (4*Cmid, TP)
    h = jnp.maximum(h, 0.0)

    # ---- Layer 2 + ReLU, exploiting the (di,dj) block-diagonal structure:
    # each of the 4 row-groups of h uses the SAME small (4*Cout, Cmid) weight.
    for dd in range(4):
        y = b2                                          # (4*Cout, 1)
        for cm in range(cmid):
            r = dd * cmid + cm
            y = y + w2[:, cm:cm + 1] * h[r:r + 1, :]    # -> (4*Cout, TP)
        o_ref[dd] = jnp.maximum(y, 0.0).astype(o_ref.dtype)


# --------------------------------------------------------------------------
# Wrapper-side weight packing (trace-time, tiny).
# --------------------------------------------------------------------------
def _pack_layer1(w1, b1):
    # w1: (Cin, Cmid, 2, 2) -> (4*Cmid, Cin), row = (2*di+dj)*Cmid + cm
    cin, cmid = w1.shape[0], w1.shape[1]
    w1all = jnp.transpose(w1, (2, 3, 1, 0)).reshape(4 * cmid, cin)
    b1rep = jnp.tile(b1, 4).reshape(4 * cmid, 1)
    return w1all, b1rep


def _pack_layer2(w2, b2):
    # w2: (Cmid, Cout, 2, 2) -> (4*Cout, Cmid), row = (2*di2+dj2)*Cout + co
    cmid, cout = w2.shape[0], w2.shape[1]
    w2s = jnp.transpose(w2, (2, 3, 1, 0)).reshape(4 * cout, cmid)
    b2rep = jnp.tile(b2, 4).reshape(4 * cout, 1)
    return w2s, b2rep


def _pick_pixel_tile(p):
    # Biggest lane-dense tile (multiple of 128) that divides P; else full P.
    for tp in (2048, 1024, 512, 256, 128):
        if p % tp == 0:
            return tp
    return p


# --------------------------------------------------------------------------
# UpscaleDecoder forward (scale_factor=4), NCHW in / NCHW out.
# --------------------------------------------------------------------------
@functools.partial(jax.jit, static_argnames=("scale_factor",))
def upscale_decoder_forward(x_nchw, params, scale_factor=4):
    if scale_factor != 4:
        raise NotImplementedError
    N, Cin, H, W = x_nchw.shape
    Cmid = params["w1"].shape[1]
    Cout = params["w2"].shape[1]
    P = H * W
    TP = _pick_pixel_tile(P)
    R1 = 4 * Cmid
    S2 = 4 * Cout

    x3 = x_nchw.reshape(N, Cin, P)                      # free reshape, NCHW-native

    w1all, b1rep = _pack_layer1(params["w1"], params["b1"])
    w2s, b2rep = _pack_layer2(params["w2"], params["b2"])

    out = pl.pallas_call(
        _fused_decoder_kernel,
        out_shape=jax.ShapeDtypeStruct((N, 4, S2, P), x_nchw.dtype),
        grid_spec=pltpu.PrefetchScalarGridSpec(
            num_scalar_prefetch=0,
            grid=(N, P // TP),
            in_specs=[
                pl.BlockSpec((None, Cin, TP), lambda n, p: (n, 0, p)),   # activations
                pl.BlockSpec((R1, Cin), lambda n, p: (0, 0)),            # layer-1 weight
                pl.BlockSpec((R1, 1), lambda n, p: (0, 0)),              # layer-1 bias
                pl.BlockSpec((S2, Cmid), lambda n, p: (0, 0)),           # layer-2 weight
                pl.BlockSpec((S2, 1), lambda n, p: (0, 0)),              # layer-2 bias
            ],
            out_specs=pl.BlockSpec((None, 4, S2, TP), lambda n, p: (n, 0, 0, p)),
        ),
        compiler_params=pltpu.CompilerParams(
            dimension_semantics=("parallel", "parallel")),
    )(x3, w1all, b1rep, w2s, b2rep)

    # Single layout-plumbing pass on the (tiny) output:
    # (N, dd=(di,dj), s=(di2,dj2,co), H*W) -> NCHW, out[n,co,4i+2di+di2,4j+2dj+dj2].
    y = out.reshape(N, 2, 2, 2, 2, Cout, H, W)          # (n,di,dj,di2,dj2,co,i,j)
    y = jnp.transpose(y, (0, 5, 6, 1, 3, 7, 2, 4))      # (n,co,i,di,di2,j,dj,dj2)
    return y.reshape(N, Cout, 4 * H, 4 * W)


# --------------------------------------------------------------------------
# Pure-JAX reference (exact PyTorch ConvTranspose2d(k=2,s=2)+ReLU semantics).
# --------------------------------------------------------------------------
def _ref_tconv_relu(x_nchw, w, b):
    N, Cin, H, W = x_nchw.shape
    Cout = w.shape[1]
    y = jnp.einsum("nchw,copq->nohpwq", x_nchw, w,
                   precision=lax.Precision.HIGHEST)     # (N,Cout,H,2,W,2)
    y = y + b[None, :, None, None, None, None]
    y = jnp.maximum(y, 0.0)
    return y.reshape(N, Cout, 2 * H, 2 * W)


def _ref_forward(x_nchw, params):
    x = _ref_tconv_relu(x_nchw, params["w1"], params["b1"])
    x = _ref_tconv_relu(x, params["w2"], params["b2"])
    return x


# --------------------------------------------------------------------------
# Deterministic parameter init (shapes from the module __init__, scale=4):
#   w1: (Cin, Cin//2, 2, 2), b1: (Cin//2,)
#   w2: (Cin//2, out_channels, 2, 2), b2: (out_channels,)
# --------------------------------------------------------------------------
def init_params(key, in_channels, out_channels):
    c_mid = in_channels // 2
    k1, k2, k3, k4 = jax.random.split(key, 4)
    bound1 = 1.0 / (in_channels * 4) ** 0.5
    bound2 = 1.0 / (c_mid * 4) ** 0.5
    return {
        "w1": jax.random.uniform(k1, (in_channels, c_mid, 2, 2), jnp.float32,
                                 -bound1, bound1),
        "b1": jax.random.uniform(k2, (c_mid,), jnp.float32, -bound1, bound1),
        "w2": jax.random.uniform(k3, (c_mid, out_channels, 2, 2), jnp.float32,
                                 -bound2, bound2),
        "b2": jax.random.uniform(k4, (out_channels,), jnp.float32, -bound2, bound2),
    }


if __name__ == "__main__":
    key = jax.random.PRNGKey(0)
    kx, kp = jax.random.split(key)

    N, Cin, H, W = 2, 4, 16, 16
    out_channels = 3
    x = jax.random.normal(kx, (N, Cin, H, W), jnp.float32)  # NCHW, like PyTorch
    params = init_params(kp, Cin, out_channels)

    y = upscale_decoder_forward(x, params, scale_factor=4)
    y = jax.block_until_ready(y)

    assert y.shape == (N, out_channels, 4 * H, 4 * W), y.shape

    y_ref = _ref_forward(x, params)
    assert jnp.allclose(y, y_ref, atol=1e-5, rtol=1e-5), \
        float(jnp.max(jnp.abs(y - y_ref)))

    print("KERNEL_OK")
</pallas_src>

<mosaic_0001>
module attributes {stable_mosaic.version = 11 : i64} {
  func.func @_fused_decoder_kernel(%arg0: i32, %arg1: i32, %arg2: memref<1x4x256xf32, #tpu.memory_space<vmem>>, %arg3: memref<8x4xf32, #tpu.memory_space<vmem>>, %arg4: memref<8x1xf32, #tpu.memory_space<vmem>>, %arg5: memref<12x2xf32, #tpu.memory_space<vmem>>, %arg6: memref<12x1xf32, #tpu.memory_space<vmem>>, %arg7: memref<1x4x12x256xf32, #tpu.memory_space<vmem>>) attributes {dimension_semantics = [#tpu.dimension_semantics<parallel>, #tpu.dimension_semantics<parallel>], iteration_bounds = array<i64: 2, 1>, scalar_prefetch = 0 : i64, scratch_operands = 0 : i64, tpu.core_type = #tpu.core_type<tc>, window_params = [{transform_indices = @transform_0, window_bounds = array<i64: 1, 4, 256>}, {pipeline_mode = #tpu.pipeline_mode<synchronous>, transform_indices = @transform_1, window_bounds = array<i64: 8, 4>}, {pipeline_mode = #tpu.pipeline_mode<synchronous>, transform_indices = @transform_2, window_bounds = array<i64: 8, 1>}, {pipeline_mode = #tpu.pipeline_mode<synchronous>, transform_indices = @transform_3, window_bounds = array<i64: 12, 2>}, {pipeline_mode = #tpu.pipeline_mode<synchronous>, transform_indices = @transform_4, window_bounds = array<i64: 12, 1>}, {transform_indices = @transform_5, window_bounds = array<i64: 1, 4, 12, 256>}]} {
    %c0 = arith.constant 0 : index
    %c0_0 = arith.constant 0 : index
    %c0_1 = arith.constant 0 : index
    %0 = vector.load %arg2[%c0, %c0_0, %c0_1] : memref<1x4x256xf32, #tpu.memory_space<vmem>>, vector<1x4x256xf32>
    %1 = vector.shape_cast %0 : vector<1x4x256xf32> to vector<4x256xf32>
    %c0_2 = arith.constant 0 : index
    %c0_3 = arith.constant 0 : index
    %2 = vector.load %arg3[%c0_2, %c0_3] : memref<8x4xf32, #tpu.memory_space<vmem>>, vector<8x4xf32>
    %c0_4 = arith.constant 0 : index
    %c0_5 = arith.constant 0 : index
    %3 = vector.load %arg5[%c0_4, %c0_5] : memref<12x2xf32, #tpu.memory_space<vmem>>, vector<12x2xf32>
    %c0_6 = arith.constant 0 : index
    %c0_7 = arith.constant 0 : index
    %4 = vector.load %arg6[%c0_6, %c0_7] : memref<12x1xf32, #tpu.memory_space<vmem>>, vector<12x1xf32>
    %c0_8 = arith.constant 0 : index
    %c0_9 = arith.constant 0 : index
    %5 = vector.load %arg4[%c0_8, %c0_9] : memref<8x1xf32, #tpu.memory_space<vmem>>, vector<8x1xf32>
    %6 = vector.extract_strided_slice %2 {offsets = [0, 0], sizes = [8, 1], strides = [1, 1]} : vector<8x4xf32> to vector<8x1xf32>
    %7 = vector.extract_strided_slice %1 {offsets = [0, 0], sizes = [1, 256], strides = [1, 1]} : vector<4x256xf32> to vector<1x256xf32>
    %8 = vector.broadcast %6 : vector<8x1xf32> to vector<8x256xf32>
    %9 = vector.broadcast %7 : vector<1x256xf32> to vector<8x256xf32>
    %10 = arith.mulf %8, %9 : vector<8x256xf32>
    %11 = vector.broadcast %5 : vector<8x1xf32> to vector<8x256xf32>
    %12 = arith.addf %11, %10 : vector<8x256xf32>
    %13 = vector.extract_strided_slice %2 {offsets = [0, 1], sizes = [8, 1], strides = [1, 1]} : vector<8x4xf32> to vector<8x1xf32>
    %14 = vector.extract_strided_slice %1 {offsets = [1, 0], sizes = [1, 256], strides = [1, 1]} : vector<4x256xf32> to vector<1x256xf32>
    %15 = vector.broadcast %13 : vector<8x1xf32> to vector<8x256xf32>
    %16 = vector.broadcast %14 : vector<1x256xf32> to vector<8x256xf32>
    %17 = arith.mulf %15, %16 : vector<8x256xf32>
    %18 = arith.addf %12, %17 : vector<8x256xf32>
    %19 = vector.extract_strided_slice %2 {offsets = [0, 2], sizes = [8, 1], strides = [1, 1]} : vector<8x4xf32> to vector<8x1xf32>
    %20 = vector.extract_strided_slice %1 {offsets = [2, 0], sizes = [1, 256], strides = [1, 1]} : vector<4x256xf32> to vector<1x256xf32>
    %21 = vector.broadcast %19 : vector<8x1xf32> to vector<8x256xf32>
    %22 = vector.broadcast %20 : vector<1x256xf32> to vector<8x256xf32>
    %23 = arith.mulf %21, %22 : vector<8x256xf32>
    %24 = arith.addf %18, %23 : vector<8x256xf32>
    %25 = vector.extract_strided_slice %2 {offsets = [0, 3], sizes = [8, 1], strides = [1, 1]} : vector<8x4xf32> to vector<8x1xf32>
    %26 = vector.extract_strided_slice %1 {offsets = [3, 0], sizes = [1, 256], strides = [1, 1]} : vector<4x256xf32> to vector<1x256xf32>
    %27 = vector.broadcast %25 : vector<8x1xf32> to vector<8x256xf32>
    %28 = vector.broadcast %26 : vector<1x256xf32> to vector<8x256xf32>
    %29 = arith.mulf %27, %28 : vector<8x256xf32>
    %30 = arith.addf %24, %29 : vector<8x256xf32>
    %cst = arith.constant 0.000000e+00 : f32
    %31 = vector.broadcast %cst : f32 to vector<8x256xf32>
    %32 = arith.maximumf %30, %31 : vector<8x256xf32>
    %33 = vector.extract_strided_slice %3 {offsets = [0, 0], sizes = [12, 1], strides = [1, 1]} : vector<12x2xf32> to vector<12x1xf32>
    %34 = vector.extract_strided_slice %32 {offsets = [0, 0], sizes = [1, 256], strides = [1, 1]} : vector<8x256xf32> to vector<1x256xf32>
    %35 = vector.broadcast %33 : vector<12x1xf32> to vector<12x256xf32>
    %36 = vector.broadcast %34 : vector<1x256xf32> to vector<12x256xf32>
    %37 = arith.mulf %35, %36 : vector<12x256xf32>
    %38 = vector.broadcast %4 : vector<12x1xf32> to vector<12x256xf32>
    %39 = arith.addf %38, %37 : vector<12x256xf32>
    %40 = vector.extract_strided_slice %3 {offsets = [0, 1], sizes = [12, 1], strides = [1, 1]} : vector<12x2xf32> to vector<12x1xf32>
    %41 = vector.extract_strided_slice %32 {offsets = [1, 0], sizes = [1, 256], strides = [1, 1]} : vector<8x256xf32> to vector<1x256xf32>
    %42 = vector.broadcast %40 : vector<12x1xf32> to vector<12x256xf32>
    %43 = vector.broadcast %41 : vector<1x256xf32> to vector<12x256xf32>
    %44 = arith.mulf %42, %43 : vector<12x256xf32>
    %45 = arith.addf %39, %44 : vector<12x256xf32>
    %cst_10 = arith.constant 0.000000e+00 : f32
    %46 = vector.broadcast %cst_10 : f32 to vector<12x256xf32>
    %47 = arith.maximumf %45, %46 : vector<12x256xf32>
    %c0_11 = arith.constant 0 : index
    %c0_12 = arith.constant 0 : index
    %c0_13 = arith.constant 0 : index
    %c0_14 = arith.constant 0 : index
    %48 = vector.load %arg7[%c0_11, %c0_12, %c0_13, %c0_14] : memref<1x4x12x256xf32, #tpu.memory_space<vmem>>, vector<1x1x12x256xf32>
    %49 = vector.shape_cast %48 : vector<1x1x12x256xf32> to vector<12x256xf32>
    %50 = vector.shape_cast %47 : vector<12x256xf32> to vector<1x1x12x256xf32>
    tpu.vector_store %arg7[%c0_11, %c0_12, %c0_13, %c0_14], %50 {strides = array<i32>} : memref<1x4x12x256xf32, #tpu.memory_space<vmem>>, vector<1x1x12x256xf32>,
    %51 = vector.extract_strided_slice %3 {offsets = [0, 0], sizes = [12, 1], strides = [1, 1]} : vector<12x2xf32> to vector<12x1xf32>
    %52 = vector.extract_strided_slice %32 {offsets = [2, 0], sizes = [1, 256], strides = [1, 1]} : vector<8x256xf32> to vector<1x256xf32>
    %53 = vector.broadcast %51 : vector<12x1xf32> to vector<12x256xf32>
    %54 = vector.broadcast %52 : vector<1x256xf32> to vector<12x256xf32>
    %55 = arith.mulf %53, %54 : vector<12x256xf32>
    %56 = vector.broadcast %4 : vector<12x1xf32> to vector<12x256xf32>
    %57 = arith.addf %56, %55 : vector<12x256xf32>
    %58 = vector.extract_strided_slice %3 {offsets = [0, 1], sizes = [12, 1], strides = [1, 1]} : vector<12x2xf32> to vector<12x1xf32>
    %59 = vector.extract_strided_slice %32 {offsets = [3, 0], sizes = [1, 256], strides = [1, 1]} : vector<8x256xf32> to vector<1x256xf32>
    %60 = vector.broadcast %58 : vector<12x1xf32> to vector<12x256xf32>
    %61 = vector.broadcast %59 : vector<1x256xf32> to vector<12x256xf32>
    %62 = arith.mulf %60, %61 : vector<12x256xf32>
    %63 = arith.addf %57, %62 : vector<12x256xf32>
    %cst_15 = arith.constant 0.000000e+00 : f32
    %64 = vector.broadcast %cst_15 : f32 to vector<12x256xf32>
    %65 = arith.maximumf %63, %64 : vector<12x256xf32>
    %c0_16 = arith.constant 0 : index
    %c1 = arith.constant 1 : index
    %c0_17 = arith.constant 0 : index
    %c0_18 = arith.constant 0 : index
    %66 = vector.load %arg7[%c0_16, %c1, %c0_17, %c0_18] : memref<1x4x12x256xf32, #tpu.memory_space<vmem>>, vector<1x1x12x256xf32>
    %67 = vector.shape_cast %66 : vector<1x1x12x256xf32> to vector<12x256xf32>
    %68 = vector.shape_cast %65 : vector<12x256xf32> to vector<1x1x12x256xf32>
    tpu.vector_store %arg7[%c0_16, %c1, %c0_17, %c0_18], %68 {strides = array<i32>} : memref<1x4x12x256xf32, #tpu.memory_space<vmem>>, vector<1x1x12x256xf32>,
    %69 = vector.extract_strided_slice %3 {offsets = [0, 0], sizes = [12, 1], strides = [1, 1]} : vector<12x2xf32> to vector<12x1xf32>
    %70 = vector.extract_strided_slice %32 {offsets = [4, 0], sizes = [1, 256], strides = [1, 1]} : vector<8x256xf32> to vector<1x256xf32>
    %71 = vector.broadcast %69 : vector<12x1xf32> to vector<12x256xf32>
    %72 = vector.broadcast %70 : vector<1x256xf32> to vector<12x256xf32>
    %73 = arith.mulf %71, %72 : vector<12x256xf32>
    %74 = vector.broadcast %4 : vector<12x1xf32> to vector<12x256xf32>
    %75 = arith.addf %74, %73 : vector<12x256xf32>
    %76 = vector.extract_strided_slice %3 {offsets = [0, 1], sizes = [12, 1], strides = [1, 1]} : vector<12x2xf32> to vector<12x1xf32>
    %77 = vector.extract_strided_slice %32 {offsets = [5, 0], sizes = [1, 256], strides = [1, 1]} : vector<8x256xf32> to vector<1x256xf32>
    %78 = vector.broadcast %76 : vector<12x1xf32> to vector<12x256xf32>
    %79 = vector.broadcast %77 : vector<1x256xf32> to vector<12x256xf32>
    %80 = arith.mulf %78, %79 : vector<12x256xf32>
    %81 = arith.addf %75, %80 : vector<12x256xf32>
    %cst_19 = arith.constant 0.000000e+00 : f32
    %82 = vector.broadcast %cst_19 : f32 to vector<12x256xf32>
    %83 = arith.maximumf %81, %82 : vector<12x256xf32>
    %c0_20 = arith.constant 0 : index
    %c2 = arith.constant 2 : index
    %c0_21 = arith.constant 0 : index
    %c0_22 = arith.constant 0 : index
    %84 = vector.load %arg7[%c0_20, %c2, %c0_21, %c0_22] : memref<1x4x12x256xf32, #tpu.memory_space<vmem>>, vector<1x1x12x256xf32>
    %85 = vector.shape_cast %84 : vector<1x1x12x256xf32> to vector<12x256xf32>
    %86 = vector.shape_cast %83 : vector<12x256xf32> to vector<1x1x12x256xf32>
    tpu.vector_store %arg7[%c0_20, %c2, %c0_21, %c0_22], %86 {strides = array<i32>} : memref<1x4x12x256xf32, #tpu.memory_space<vmem>>, vector<1x1x12x256xf32>,
    %87 = vector.extract_strided_slice %3 {offsets = [0, 0], sizes = [12, 1], strides = [1, 1]} : vector<12x2xf32> to vector<12x1xf32>
    %88 = vector.extract_strided_slice %32 {offsets = [6, 0], sizes = [1, 256], strides = [1, 1]} : vector<8x256xf32> to vector<1x256xf32>
    %89 = vector.broadcast %87 : vector<12x1xf32> to vector<12x256xf32>
    %90 = vector.broadcast %88 : vector<1x256xf32> to vector<12x256xf32>
    %91 = arith.mulf %89, %90 : vector<12x256xf32>
    %92 = vector.broadcast %4 : vector<12x1xf32> to vector<12x256xf32>
    %93 = arith.addf %92, %91 : vector<12x256xf32>
    %94 = vector.extract_strided_slice %3 {offsets = [0, 1], sizes = [12, 1], strides = [1, 1]} : vector<12x2xf32> to vector<12x1xf32>
    %95 = vector.extract_strided_slice %32 {offsets = [7, 0], sizes = [1, 256], strides = [1, 1]} : vector<8x256xf32> to vector<1x256xf32>
    %96 = vector.broadcast %94 : vector<12x1xf32> to vector<12x256xf32>
    %97 = vector.broadcast %95 : vector<1x256xf32> to vector<12x256xf32>
    %98 = arith.mulf %96, %97 : vector<12x256xf32>
    %99 = arith.addf %93, %98 : vector<12x256xf32>
    %cst_23 = arith.constant 0.000000e+00 : f32
    %100 = vector.broadcast %cst_23 : f32 to vector<12x256xf32>
    %101 = arith.maximumf %99, %100 : vector<12x256xf32>
    %c0_24 = arith.constant 0 : index
    %c3 = arith.constant 3 : index
    %c0_25 = arith.constant 0 : index
    %c0_26 = arith.constant 0 : index
    %102 = vector.load %arg7[%c0_24, %c3, %c0_25, %c0_26] : memref<1x4x12x256xf32, #tpu.memory_space<vmem>>, vector<1x1x12x256xf32>
    %103 = vector.shape_cast %102 : vector<1x1x12x256xf32> to vector<12x256xf32>
    %104 = vector.shape_cast %101 : vector<12x256xf32> to vector<1x1x12x256xf32>
    tpu.vector_store %arg7[%c0_24, %c3, %c0_25, %c0_26], %104 {strides = array<i32>} : memref<1x4x12x256xf32, #tpu.memory_space<vmem>>, vector<1x1x12x256xf32>,
    return
  }
  func.func @transform_0(%arg0: i32, %arg1: i32) -> (i32, i32, i32) {
    %c0_i32 = arith.constant 0 : i32
    %c0_i32_0 = arith.constant 0 : i32
    return %arg0, %c0_i32, %arg1 : i32, i32, i32
  }
  func.func @transform_1(%arg0: i32, %arg1: i32) -> (i32, i32) {
    %c0_i32 = arith.constant 0 : i32
    %c0_i32_0 = arith.constant 0 : i32
    %c0_i32_1 = arith.constant 0 : i32
    return %c0_i32, %c0_i32_0 : i32, i32
  }
  func.func @transform_2(%arg0: i32, %arg1: i32) -> (i32, i32) {
    %c0_i32 = arith.constant 0 : i32
    %c0_i32_0 = arith.constant 0 : i32
    %c0_i32_1 = arith.constant 0 : i32
    return %c0_i32, %c0_i32_0 : i32, i32
  }
  func.func @transform_3(%arg0: i32, %arg1: i32) -> (i32, i32) {
    %c0_i32 = arith.constant 0 : i32
    %c0_i32_0 = arith.constant 0 : i32
    %c0_i32_1 = arith.constant 0 : i32
    return %c0_i32, %c0_i32_0 : i32, i32
  }
  func.func @transform_4(%arg0: i32, %arg1: i32) -> (i32, i32) {
    %c0_i32 = arith.constant 0 : i32
    %c0_i32_0 = arith.constant 0 : i32
    %c0_i32_1 = arith.constant 0 : i32
    return %c0_i32, %c0_i32_0 : i32, i32
  }
  func.func @transform_5(%arg0: i32, %arg1: i32) -> (i32, i32, i32, i32) {
    %c0_i32 = arith.constant 0 : i32
    %c0_i32_0 = arith.constant 0 : i32
    %c0_i32_1 = arith.constant 0 : i32
    return %arg0, %c0_i32, %c0_i32_0, %arg1 : i32, i32, i32, i32
  }
}

</mosaic_0001>

<llo_original>
// kernel: tile.0
$region0: #{tile.0}
  %s0 = inlined_call_operand.vmem [shape: f32[4,2], index: 0, kind: input, shape index: {}]
  %s1 = inlined_call_operand.vmem [shape: f32[8,1], index: 1, kind: output, shape index: {}]
  $region1: #{tile.0} parent=0
    #allocation0 [shape = 'u8[4096]{0}', space=vmem, size = 0x1000, scoped, tag = 'scoped mem for input reshape']
    %s3 = sshllo.u32 0, 4
    %v4 = vld [vmem:[%s0] sm:%s3]
    %5 = vst [vmem:[#allocation0] sm:%s3] %v4
    %v6 = vld [vmem:[#allocation0] sm:$0xf]
    %vm7 = vcmask 7168
    %8 = vst.msk [vmem:[%s1] ss:$2 sm:$0xf] %vm7, %v6
    %v9 = vld [vmem:[#allocation0] sm:$0xf]
    %10 = vrot.lane.b32.xlu0 %v9, 127
    %v11 = vpop.permute.xlu0 %10
    %vm12 = vcmask 7168
    %s13 = scalar_lea.vmem %s1, 1
    %14 = vst.msk [vmem:[%s13] ss:$2 sm:$0xf] %vm12, %v11

// kernel: tile.18
$region0: #{tile.18}
  #allocation2 [shape = 's32[1]{0}', space=sflag, size = 0x4, scoped, tag = 'scoped memory for tile.18']
  %s0 = inlined_call_operand.hbm [shape: f32[3], index: 0, kind: input, shape index: {}]
  %s1 = inlined_call_operand.vmem [shape: f32[4,3], index: 1, kind: output, shape index: {}]
  $region1: #{tile.18} parent=0
    #allocation0 [shape = 'u8[512]{0}', space=vmem, size = 0x400, scoped, tag = 'operand span for operand 0']
    #allocation1 [shape = 's32[1]{0}', space=sflag, size = 0x4, scoped, tag = 'scoped memory for tile.18']
    %2 = vsyncpa [#allocation1], 0
    // Predicated region
    $region2: #{tile.18} parent=1 // pred_check
      _
    $region3: #{tile.18} parent=1 // pred_check_branch
      %4 = sbr.rel (0) target = $region5
    $region4: #{tile.18} parent=1 // pred_region
      %s6 = ssub.s32 16, 16
      %7 = vsyncadd [#allocation1], %s6
      %s9 = sshll.u32 [#allocation0], 4
      %s10 = int_to_ptr.vmem [resolvable:$true] %s9
      %12 = dma.hbm_to_vmem [thread:$0]  %s0, 16, %s10, [#allocation1]
    $region5: #{tile.18} parent=1 // pred_fallthru
      _
    // Predicated region
    $region6: #{tile.18} parent=1 // pred_check
      _
    $region7: #{tile.18} parent=1 // pred_check_branch
      %14 = sbr.rel (0) target = $region9
    $region8: #{tile.18} parent=1 // pred_region
      %15 = dma.done [#allocation1], 16
    $region9: #{tile.18} parent=1 // pred_fallthru
      _
    %v16 = vld [vmem:[#allocation0] ss:$0 sm:$0xff]
    %17 = vst [vmem:[%s1] sm:$0xf] %v16
    %18 = vsyncpa [#allocation1], 1

// kernel: tile.13
$region0: #{tile.13}
  #allocation2 [shape = 's32[1]{0}', space=sflag, size = 0x4, scoped, tag = 'scoped memory for tile.13']
  %s0 = inlined_call_operand.hbm [shape: f32[2], index: 0, kind: input, shape index: {}]
  %s1 = inlined_call_operand.vmem [shape: f32[4,2], index: 1, kind: output, shape index: {}]
  $region1: #{tile.13} parent=0
    #allocation0 [shape = 'u8[512]{0}', space=vmem, size = 0x400, scoped, tag = 'operand span for operand 0']
    #allocation1 [shape = 's32[1]{0}', space=sflag, size = 0x4, scoped, tag = 'scoped memory for tile.13']
    %2 = vsyncpa [#allocation1], 0
    // Predicated region
    $region2: #{tile.13} parent=1 // pred_check
      _
    $region3: #{tile.13} parent=1 // pred_check_branch
      %4 = sbr.rel (0) target = $region5
    $region4: #{tile.13} parent=1 // pred_region
      %s6 = ssub.s32 16, 16
      %7 = vsyncadd [#allocation1], %s6
      %s9 = sshll.u32 [#allocation0], 4
      %s10 = int_to_ptr.vmem [resolvable:$true] %s9
      %12 = dma.hbm_to_vmem [thread:$0]  %s0, 16, %s10, [#allocation1]
    $region5: #{tile.13} parent=1 // pred_fallthru
      _
    // Predicated region
    $region6: #{tile.13} parent=1 // pred_check
      _
    $region7: #{tile.13} parent=1 // pred_check_branch
      %14 = sbr.rel (0) target = $region9
    $region8: #{tile.13} parent=1 // pred_region
      %15 = dma.done [#allocation1], 16
    $region9: #{tile.13} parent=1 // pred_fallthru
      _
    %v16 = vld [vmem:[#allocation0] ss:$0 sm:$0xff]
    %17 = vst [vmem:[%s1] sm:$0xf] %v16
    %18 = vsyncpa [#allocation1], 1

// kernel: tile.1
$region0: #{tile.1}
  %s0 = inlined_call_operand.vmem [shape: f32[4,3], index: 0, kind: input, shape index: {}]
  %s1 = inlined_call_operand.vmem [shape: f32[12,1], index: 1, kind: output, shape index: {}]
  $region1: #{tile.1} parent=0
    #allocation0 [shape = 'u8[4096]{0}', space=vmem, size = 0x1000, scoped, tag = 'scoped mem for input reshape']
    %s3 = sshllo.u32 0, 4
    %v4 = vld [vmem:[%s0] sm:%s3]
    %5 = vst [vmem:[#allocation0] sm:%s3] %v4
    %v6 = vld [vmem:[#allocation0] sm:$0xf]
    %vm7 = vcmask 7168
    %8 = vst.msk [vmem:[%s1] ss:$3 sm:$0xf] %vm7, %v6
    %v9 = vld [vmem:[#allocation0] sm:$0xf]
    %10 = vrot.lane.b32.xlu0 %v9, 127
    %v11 = vpop.permute.xlu0 %10
    %vm12 = vcmask 7168
    %s13 = scalar_lea.vmem %s1, 1
    %14 = vst.msk [vmem:[%s13] ss:$3 sm:$0xf] %vm12, %v11
    %v15 = vld [vmem:[#allocation0] sm:$0xf]
    %16 = vrot.lane.b32.xlu0 %v15, 126
    %v17 = vpop.permute.xlu0 %16
    %vm18 = vcmask 7168
    %s19 = scalar_lea.vmem %s1, 2
    %20 = vst.msk [vmem:[%s19] ss:$3 sm:$0xf] %vm18, %v17

// kernel: upscale_decoder_forward.1
$region0: #{upscale_decoder_forward.1}
  #allocation0 [shape = 'u32[]', space=smem, size = 0x4, offset = 0x4, fixed_abs, tag = 'smem constant byte address 0x4 - core index']
  #allocation1 [shape = 'u32[144,128]{1,0:T(1,128)}', space=vmem, size = 0x12000, scoped, tag = 'internal scratch']
  %s0 = inlined_call_operand.vmem [shape: f32[2,4,256], index: 0, kind: input, shape index: {}]
  %s1 = inlined_call_operand.vmem [shape: f32[8,4], index: 1, kind: input, shape index: {}]
  %s2 = inlined_call_operand.vmem [shape: f32[8,1], index: 2, kind: input, shape index: {}]
  %s3 = inlined_call_operand.vmem [shape: f32[12,2], index: 3, kind: input, shape index: {}]
  %s4 = inlined_call_operand.vmem [shape: f32[12,1], index: 4, kind: input, shape index: {}]
  %s5 = inlined_call_operand.vmem [shape: f32[2,4,12,256], index: 5, kind: output, shape index: {}]
  %s6 = sld [smem:[#allocation0]]
  $region53: #{upscale_decoder_forward.1} parent=0
    _
  %s8 = ssub.s32 1, %s6
  %s9 = scalar_select 0, %s8, %s6
  loop: start=0, step=1, limit=4
  $region2: #{upscale_decoder_forward.1} parent=0 // loop_pre_header
    _
  $region3: #{upscale_decoder_forward.1} parent=0 // loop_header
    %s11 = sphi 0, %s15
    %p12 = scmp.ge.s32.totalorder %s11, 4
    %s18 = sphi 0, %s30
    %s19 = sphi 0, %s26
    %s20 = sphi 0, %s18
    %s21 = sphi 0, %s19
    %s22 = sphi 0, %s20
    %s23 = sphi 0, %s21
    %s35 = sphi 0, %s37
    %s38 = sphi 0, %s35
    %s39 = sphi 0, %s38
    %s55 = sphi 0, %s39
    %s59 = sphi 0, %s59
    %s61 = sphi 0, %s59
    %s62 = sphi 0, %s61
    %s76 = sphi 0, %s62
    %s80 = sphi 0, %s80
    %s82 = sphi 0, %s80
    %s83 = sphi 0, %s82
    %s97 = sphi 0, %s83
    %s101 = sphi 0, %s101
    %s103 = sphi 0, %s101
    %s104 = sphi 0, %s103
    %s118 = sphi 0, %s104
    %s122 = sphi 0, %s122
    %s124 = sphi 0, %s122
    %s125 = sphi 0, %s124
    %s139 = sphi 0, %s125
    %s147 = sphi 0, %s149
    %s150 = sphi 0, %s147
    %s151 = sphi 0, %s150
    %s167 = sphi 0, %s151
  $region4: #{upscale_decoder_forward.1} parent=0 // loop_header_branch
    %14 = sbr.rel (%p12) target = $region8
  $region5: #{upscale_decoder_forward.1} parent=0 // loop_body
    %s16 = ssub.s32 %s11, 1
    %s17 = ssub.s32 %s11, 2
    %s24 = sadd.s32 1, %s19
    %p25 = scmp.ge.s32.totalorder %s24, 1
    %s26 = scalar_select %p25, 0, %s24
    %s27 = sadd.s32 1, %s18
    %s28 = scalar_select %p25, %s27, %s18
    %p29 = scmp.ge.s32.totalorder %s28, 2
    %s30 = scalar_select %p29, 0, %s28
    %s31 = ssub.s32 %s18, %s30
    %s32 = ssub.s32 %s19, %s26
    %s33 = sor.u32 %s31, %s32
    %p34 = scmp.eq.s32.totalorder %s33, 0
    %s36 = sadd.s32 %s35, 1
    %s37 = scalar_select %p34, %s35, %s36
    %p40 = pneg %p34
    %p41 = scmp.eq.s32.totalorder %s11, 1
    %p42 = por %p40, %p41
    %p43 = scmp.ne.s32.totalorder %s35, %s38
    %p44 = scmp.eq.s32.totalorder %s11, 0
    %p45 = por %p43, %p44
    %p46 = scmp.ne.s32.totalorder %s35, %s38
    %p47 = scmp.eq.s32.totalorder %s16, 1
    %p48 = por %p46, %p47
    %p49 = scmp.ne.s32.totalorder %s38, %s39
    %p50 = scmp.eq.s32.totalorder %s16, 0
    %p51 = por %p49, %p50
    %p52 = scmp.ne.s32.totalorder %s38, %s39
    %p53 = scmp.eq.s32.totalorder %s17, 1
    %p54 = por %p52, %p53
    %p56 = scmp.ne.s32.totalorder %s39, %s55
    %p57 = scmp.eq.s32.totalorder %s17, 0
    %p58 = por %p56, %p57
    %s60 = sadd.s32 %s59, 1
    %p63 = scmp.eq.s32.totalorder %s11, 1
    %p64 = scmp.ne.s32.totalorder %s59, %s61
    %p65 = scmp.eq.s32.totalorder %s11, 0
    %p66 = por %p64, %p65
    %p67 = scmp.ne.s32.totalorder %s59, %s61
    %p68 = scmp.eq.s32.totalorder %s16, 1
    %p69 = por %p67, %p68
    %p70 = scmp.ne.s32.totalorder %s61, %s62
    %p71 = scmp.eq.s32.totalorder %s16, 0
    %p72 = por %p70, %p71
    %p73 = scmp.ne.s32.totalorder %s61, %s62
    %p74 = scmp.eq.s32.totalorder %s17, 1
    %p75 = por %p73, %p74
    %p77 = scmp.ne.s32.totalorder %s62, %s76
    %p78 = scmp.eq.s32.totalorder %s17, 0
    %p79 = por %p77, %p78
    %s81 = sadd.s32 %s80, 1
    %p84 = scmp.eq.s32.totalorder %s11, 1
    %p85 = scmp.ne.s32.totalorder %s80, %s82
    %p86 = scmp.eq.s32.totalorder %s11, 0
    %p87 = por %p85, %p86
    %p88 = scmp.ne.s32.totalorder %s80, %s82
    %p89 = scmp.eq.s32.totalorder %s16, 1
    %p90 = por %p88, %p89
    %p91 = scmp.ne.s32.totalorder %s82, %s83
    %p92 = scmp.eq.s32.totalorder %s16, 0
    %p93 = por %p91, %p92
    %p94 = scmp.ne.s32.totalorder %s82, %s83
    %p95 = scmp.eq.s32.totalorder %s17, 1
    %p96 = por %p94, %p95
    %p98 = scmp.ne.s32.totalorder %s83, %s97
    %p99 = scmp.eq.s32.totalorder %s17, 0
    %p100 = por %p98, %p99
    %s102 = sadd.s32 %s101, 1
    %p105 = scmp.eq.s32.totalorder %s11, 1
    %p106 = scmp.ne.s32.totalorder %s101, %s103
    %p107 = scmp.eq.s32.totalorder %s11, 0
    %p108 = por %p106, %p107
    %p109 = scmp.ne.s32.totalorder %s101, %s103
    %p110 = scmp.eq.s32.totalorder %s16, 1
    %p111 = por %p109, %p110
    %p112 = scmp.ne.s32.totalorder %s103, %s104
    %p113 = scmp.eq.s32.totalorder %s16, 0
    %p114 = por %p112, %p113
    %p115 = scmp.ne.s32.totalorder %s103, %s104
    %p116 = scmp.eq.s32.totalorder %s17, 1
    %p117 = por %p115, %p116
    %p119 = scmp.ne.s32.totalorder %s104, %s118
    %p120 = scmp.eq.s32.totalorder %s17, 0
    %p121 = por %p119, %p120
    %s123 = sadd.s32 %s122, 1
    %p126 = scmp.eq.s32.totalorder %s11, 1
    %p127 = scmp.ne.s32.totalorder %s122, %s124
    %p128 = scmp.eq.s32.totalorder %s11, 0
    %p129 = por %p127, %p128
    %p130 = scmp.ne.s32.totalorder %s122, %s124
    %p131 = scmp.eq.s32.totalorder %s16, 1
    %p132 = por %p130, %p131
    %p133 = scmp.ne.s32.totalorder %s124, %s125
    %p134 = scmp.eq.s32.totalorder %s16, 0
    %p135 = por %p133, %p134
    %p136 = scmp.ne.s32.totalorder %s124, %s125
    %p137 = scmp.eq.s32.totalorder %s17, 1
    %p138 = por %p136, %p137
    %p140 = scmp.ne.s32.totalorder %s125, %s139
    %p141 = scmp.eq.s32.totalorder %s17, 0
    %p142 = por %p140, %p141
    %s143 = ssub.s32 %s18, %s30
    %s144 = ssub.s32 %s19, %s26
    %s145 = sor.u32 %s143, %s144
    %p146 = scmp.eq.s32.totalorder %s145, 0
    %s148 = sadd.s32 %s147, 1
    %s149 = scalar_select %p146, %s147, %s148
    %p152 = pneg %p146
    %p153 = scmp.eq.s32.totalorder %s11, 1
    %p154 = por %p152, %p153
    %p155 = scmp.ne.s32.totalorder %s147, %s150
    %p156 = scmp.eq.s32.totalorder %s11, 0
    %p157 = por %p155, %p156
    %p158 = scmp.ne.s32.totalorder %s147, %s150
    %p159 = scmp.eq.s32.totalorder %s16, 1
    %p160 = por %p158, %p159
    %p161 = scmp.ne.s32.totalorder %s150, %s151
    %p162 = scmp.eq.s32.totalorder %s16, 0
    %p163 = por %p161, %p162
    %p164 = scmp.ne.s32.totalorder %s150, %s151
    %p165 = scmp.eq.s32.totalorder %s17, 1
    %p166 = por %p164, %p165
    %p168 = scmp.ne.s32.totalorder %s151, %s167
    %p169 = scmp.eq.s32.totalorder %s17, 0
    %p170 = por %p168, %p169
    %p171 = scmp.le.s32.totalorder 1, %s11
    %p172 = scmp.lt.s32.totalorder %s11, 3
    %p173 = pnand %p171, %p172
    %p174 = pneg %p173
    // Predicated region
    $region9: #{upscale_decoder_forward.1} parent=5 // pred_check
      _
    $region10: #{upscale_decoder_forward.1} parent=5 // pred_check_branch
      %176 = sbr.rel (%p173) target = $region12
    $region11: #{upscale_decoder_forward.1} parent=5 // pred_region
      %s177 = ssub.s32 %s11, 1
      // Predicated region
      $region13: #{upscale_decoder_forward.1} parent=11 // pred_check
        %p178 = pneg %p72
      $region14: #{upscale_decoder_forward.1} parent=11 // pred_check_branch
        %180 = sbr.rel (%p178) target = $region16
      $region15: #{upscale_decoder_forward.1} parent=11 // pred_region
        _
      $region16: #{upscale_decoder_forward.1} parent=11 // pred_fallthru
        _
      // Predicated region
      $region17: #{upscale_decoder_forward.1} parent=11 // pred_check
        %p181 = pneg %p93
      $region18: #{upscale_decoder_forward.1} parent=11 // pred_check_branch
        %183 = sbr.rel (%p181) target = $region20
      $region19: #{upscale_decoder_forward.1} parent=11 // pred_region
        _
      $region20: #{upscale_decoder_forward.1} parent=11 // pred_fallthru
        _
      // Predicated region
      $region21: #{upscale_decoder_forward.1} parent=11 // pred_check
        %p184 = pneg %p114
      $region22: #{upscale_decoder_forward.1} parent=11 // pred_check_branch
        %186 = sbr.rel (%p184) target = $region24
      $region23: #{upscale_decoder_forward.1} parent=11 // pred_region
        _
      $region24: #{upscale_decoder_forward.1} parent=11 // pred_fallthru
        _
      // Predicated region
      $region25: #{upscale_decoder_forward.1} parent=11 // pred_check
        %p187 = pneg %p135
      $region26: #{upscale_decoder_forward.1} parent=11 // pred_check_branch
        %189 = sbr.rel (%p187) target = $region28
      $region27: #{upscale_decoder_forward.1} parent=11 // pred_region
        _
      $region28: #{upscale_decoder_forward.1} parent=11 // pred_fallthru
        _
    $region12: #{upscale_decoder_forward.1} parent=5 // pred_fallthru
      _
    %p190 = scmp.lt.s32.totalorder %s11, 2
    // Predicated region
    $region29: #{upscale_decoder_forward.1} parent=5 // pred_check
      %p191 = pneg %p190
    $region30: #{upscale_decoder_forward.1} parent=5 // pred_check_branch
      %193 = sbr.rel (%p191) target = $region32
    $region31: #{upscale_decoder_forward.1} parent=5 // pred_region
      // Predicated region
      $region33: #{upscale_decoder_forward.1} parent=31 // pred_check
        %p194 = pneg %p45
      $region34: #{upscale_decoder_forward.1} parent=31 // pred_check_branch
        %196 = sbr.rel (%p194) target = $region36
      $region35: #{upscale_decoder_forward.1} parent=31 // pred_region
        %s197 = smul.u32 2, %s19
        %p198 = scmp.lt.s32.totalorder %s18, 1
        %s199 = scalar_select %p198, %s18, 1
        %p200 = scmp.lt.s32.totalorder %s197, 1
        %s201 = scalar_select %p200, %s197, 1
        %s202 = smul.addr %s199, 2
        %s203 = sadd.s32 %s201, %s202
        %s204 = smul.addr %s203, 4
        %s205 = scalar_lea.vmem %s0, %s204
        %s206 = smul.u32 2, %s19
      $region36: #{upscale_decoder_forward.1} parent=31 // pred_fallthru
        _
    $region32: #{upscale_decoder_forward.1} parent=5 // pred_fallthru
      _
    %p207 = scmp.le.s32.totalorder 1, %s11
    %p208 = scmp.lt.s32.totalorder %s11, 3
    %p209 = pnand %p207, %p208
    %p210 = pneg %p209
    // Predicated region
    $region37: #{upscale_decoder_forward.1} parent=5 // pred_check
      _
    $region38: #{upscale_decoder_forward.1} parent=5 // pred_check_branch
      %212 = sbr.rel (%p209) target = $region40
    $region39: #{upscale_decoder_forward.1} parent=5 // pred_region
      %s213 = ssub.s32 %s11, 1
      %s214 = smul.u32 2, %s21
      %p215 = scmp.lt.s32.totalorder %s20, 1
      %s216 = scalar_select %p215, %s20, 1
      %p217 = scmp.lt.s32.totalorder %s214, 1
      %s218 = scalar_select %p217, %s214, 1
      %s219 = smul.addr %s216, 2
      %s220 = sadd.s32 %s218, %s219
      %s221 = smul.addr %s220, 4
      %s222 = scalar_lea.vmem %s0, %s221
      %p223 = pneg %p51
      %p224 = pneg %p48
      %p225 = pneg %p72
      %p226 = pneg %p69
      %p227 = pneg %p93
      %p228 = pneg %p90
      %p229 = pneg %p114
      %p230 = pneg %p111
      %p231 = pneg %p135
      %p232 = pneg %p132
      %p233 = pneg %p163
      %p234 = pneg %p160
      %s235 = smul.u32 2, %s21
      %p236 = scmp.lt.s32.totalorder %s20, 1
      %s237 = scalar_select %p236, %s20, 1
      %p238 = scmp.lt.s32.totalorder %s235, 1
      %s239 = scalar_select %p238, %s235, 1
      %s240 = smul.addr %s237, 16
      %s241 = sadd.s32 %s239, %s240
      %s242 = smul.addr %s241, 8
      %s243 = scalar_lea.vmem %s5, %s242
      %s244 = smul.u32 2, %s21
      %p245 = scmp.lt.s32.totalorder %s20, 1
      %s246 = scalar_select %p245, %s20, 1
      %p247 = scmp.lt.s32.totalorder %s244, 1
      %s248 = scalar_select %p247, %s244, 1
      %s249 = smul.addr %s246, 2
      %s250 = sadd.s32 %s248, %s249
      %s251 = smul.addr %s250, 4
      %s252 = scalar_lea.vmem %s0, %s251
      %s253 = smul.u32 2, %s21
      %s254 = smul.u32 2, %s21
      %p255 = scmp.lt.s32.totalorder %s20, 1
      %s256 = scalar_select %p255, %s20, 1
      %p257 = scmp.lt.s32.totalorder %s254, 1
      %s258 = scalar_select %p257, %s254, 1
      %s259 = smul.addr %s256, 16
      %s260 = sadd.s32 %s258, %s259
      %s261 = smul.addr %s260, 8
      %s262 = scalar_lea.vmem %s5, %s261
      %s263 = smul.u32 2, %s21
      %v264 = vld [vmem:[%s252] sm:$0xff]
      %v265 = vld [vmem:[%s1] sm:$0xff]
      %v266 = vld [vmem:[%s3] sm:$0xff]
      %v267 = vld [vmem:[%s3 + $0x8] sm:$0xf]
      %v268 = vld [vmem:[%s4] sm:$0xff]
      %v269 = vld [vmem:[%s4 + $0x8] sm:$0xf]
      %v270 = vld [vmem:[%s2] sm:$0xff]
      %272 = vset.pattern.permute.xlu0 0
      %273 = vperm.xlu0 %272, %v265
      %v274 = vpop.permute.xlu0 %273
      %v277 = vlaneseq
      %v278 = vshrl.u32 %v277, 7
      %v279 = vsub.s32 0, %v278
      %v280 = vrot.slane %v264, %v279
      %v281 = vlaneseq
      %v282 = vshrl.u32 %v281, 7
      %v283 = vsub.s32 4, %v282
      %v284 = vrot.slane %v264, %v283
      %v287 = vlaneseq
      %v288 = vshrl.u32 %v287, 7
      %v289 = vsub.s32 0, %v288
      %v290 = vrot.slane %v280, %v289
      %v291 = vlaneseq
      %v292 = vshrl.u32 %v291, 7
      %v293 = vsub.s32 0, %v292
      %v294 = vrot.slane %v284, %v293
      %v295 = vmul.f32 %v274, %v290
      %v296 = vmul.f32 %v274, %v294
      %298 = vset.pattern.permute.xlu0 0
      %299 = vperm.xlu0 %298, %v270
      %v300 = vpop.permute.xlu0 %299
      %v302 = vadd.f32 %v300, %v295
      %v303 = vadd.f32 %v300, %v296
      %304 = vset.pattern.permute.xlu0 1
      %305 = vperm.xlu0 %304, %v265
      %v306 = vpop.permute.xlu0 %305
      %v308 = vlaneseq
      %v309 = vshrl.u32 %v308, 7
      %v310 = vsub.s32 1, %v309
      %v311 = vrot.slane %v264, %v310
      %v312 = vlaneseq
      %v313 = vshrl.u32 %v312, 7
      %v314 = vsub.s32 5, %v313
      %v315 = vrot.slane %v264, %v314
      %v318 = vlaneseq
      %v319 = vshrl.u32 %v318, 7
      %v320 = vsub.s32 1, %v319
      %v321 = vrot.slane %v311, %v320
      %v322 = vlaneseq
      %v323 = vshrl.u32 %v322, 7
      %v324 = vsub.s32 1, %v323
      %v325 = vrot.slane %v315, %v324
      %v326 = vmul.f32 %v306, %v321
      %v327 = vmul.f32 %v306, %v325
      %v328 = vadd.f32 %v302, %v326
      %v329 = vadd.f32 %v303, %v327
      %330 = vset.pattern.permute.xlu0 2
      %331 = vperm.xlu0 %330, %v265
      %v332 = vpop.permute.xlu0 %331
      %v334 = vlaneseq
      %v335 = vshrl.u32 %v334, 7
      %v336 = vsub.s32 2, %v335
      %v337 = vrot.slane %v264, %v336
      %v338 = vlaneseq
      %v339 = vshrl.u32 %v338, 7
      %v340 = vsub.s32 6, %v339
      %v341 = vrot.slane %v264, %v340
      %v344 = vlaneseq
      %v345 = vshrl.u32 %v344, 7
      %v346 = vsub.s32 2, %v345
      %v347 = vrot.slane %v337, %v346
      %v348 = vlaneseq
      %v349 = vshrl.u32 %v348, 7
      %v350 = vsub.s32 2, %v349
      %v351 = vrot.slane %v341, %v350
      %v352 = vmul.f32 %v332, %v347
      %v353 = vmul.f32 %v332, %v351
      %v354 = vadd.f32 %v328, %v352
      %v355 = vadd.f32 %v329, %v353
      %356 = vset.pattern.permute.xlu0 3
      %357 = vperm.xlu0 %356, %v265
      %v358 = vpop.permute.xlu0 %357
      %v360 = vlaneseq
      %v361 = vshrl.u32 %v360, 7
      %v362 = vsub.s32 3, %v361
      %v363 = vrot.slane %v264, %v362
      %v364 = vlaneseq
      %v365 = vshrl.u32 %v364, 7
      %v366 = vsub.s32 7, %v365
      %v367 = vrot.slane %v264, %v366
      %v370 = vlaneseq
      %v371 = vshrl.u32 %v370, 7
      %v372 = vsub.s32 3, %v371
      %v373 = vrot.slane %v363, %v372
      %v374 = vlaneseq
      %v375 = vshrl.u32 %v374, 7
      %v376 = vsub.s32 3, %v375
      %v377 = vrot.slane %v367, %v376
      %v378 = vmul.f32 %v358, %v373
      %v379 = vmul.f32 %v358, %v377
      %v380 = vadd.f32 %v354, %v378
      %v381 = vadd.f32 %v355, %v379
      %v382 = vmax.f32 %v380, 0.0
      %v383 = vmax.f32 %v381, 0.0
      %385 = vset.pattern.permute.xlu0 0
      %386 = vperm.xlu0 %385, %v266
      %v387 = vpop.permute.xlu0 %386
      %390 = vset.pattern.permute.xlu0 0
      %391 = vperm.xlu0 %390, %v267
      %v392 = vpop.permute.xlu0 %391
      %v394 = vlaneseq
      %v395 = vshrl.u32 %v394, 7
      %v396 = vsub.s32 0, %v395
      %v397 = vrot.slane %v382, %v396
      %v398 = vlaneseq
      %v399 = vshrl.u32 %v398, 7
      %v400 = vsub.s32 0, %v399
      %v401 = vrot.slane %v383, %v400
      %v402 = vmul.f32 %v387, %v397
      %v403 = vmul.f32 %v387, %v401
      %v404 = vmul.f32 %v392, %v397
      %v405 = vmul.f32 %v392, %v401
      %407 = vset.pattern.permute.xlu0 0
      %408 = vperm.xlu0 %407, %v268
      %v409 = vpop.permute.xlu0 %408
      %412 = vset.pattern.permute.xlu0 0
      %413 = vperm.xlu0 %412, %v269
      %v414 = vpop.permute.xlu0 %413
      %v416 = vadd.f32 %v409, %v402
      %v417 = vadd.f32 %v409, %v403
      %v418 = vadd.f32 %v414, %v404
      %v419 = vadd.f32 %v414, %v405
      %420 = vset.pattern.permute.xlu0 1
      %421 = vperm.xlu0 %420, %v266
      %v422 = vpop.permute.xlu0 %421
      %424 = vset.pattern.permute.xlu0 1
      %425 = vperm.xlu0 %424, %v267
      %v426 = vpop.permute.xlu0 %425
      %v428 = vlaneseq
      %v429 = vshrl.u32 %v428, 7
      %v430 = vsub.s32 1, %v429
      %v431 = vrot.slane %v382, %v430
      %v432 = vlaneseq
      %v433 = vshrl.u32 %v432, 7
      %v434 = vsub.s32 1, %v433
      %v435 = vrot.slane %v383, %v434
      %v436 = vmul.f32 %v422, %v431
      %v437 = vmul.f32 %v422, %v435
      %v438 = vmul.f32 %v426, %v431
      %v439 = vmul.f32 %v426, %v435
      %v440 = vadd.f32 %v416, %v436
      %v441 = vadd.f32 %v417, %v437
      %v442 = vadd.f32 %v418, %v438
      %v443 = vadd.f32 %v419, %v439
      %v444 = vmax.f32 %v440, 0.0
      %v445 = vmax.f32 %v441, 0.0
      %v446 = vmax.f32 %v442, 0.0
      %v447 = vmax.f32 %v443, 0.0
      %448 = vst [vmem:[%s262] sm:$0xff] %v444
      %449 = vst [vmem:[%s262 + $0x8] sm:$0xff] %v445
      %450 = vst [vmem:[%s262 + $0x10] sm:$0xf] %v446
      %451 = vst [vmem:[%s262 + $0x18] sm:$0xf] %v447
      %v452 = vlaneseq
      %v453 = vshrl.u32 %v452, 7
      %v454 = vsub.s32 2, %v453
      %v455 = vrot.slane %v382, %v454
      %v456 = vlaneseq
      %v457 = vshrl.u32 %v456, 7
      %v458 = vsub.s32 2, %v457
      %v459 = vrot.slane %v383, %v458
      %v460 = vmul.f32 %v387, %v455
      %v461 = vmul.f32 %v387, %v459
      %v462 = vmul.f32 %v392, %v455
      %v463 = vmul.f32 %v392, %v459
      %v464 = vadd.f32 %v409, %v460
      %v465 = vadd.f32 %v409, %v461
      %v466 = vadd.f32 %v414, %v462
      %v467 = vadd.f32 %v414, %v463
      %v468 = vlaneseq
      %v469 = vshrl.u32 %v468, 7
      %v470 = vsub.s32 3, %v469
      %v471 = vrot.slane %v382, %v470
      %v472 = vlaneseq
      %v473 = vshrl.u32 %v472, 7
      %v474 = vsub.s32 3, %v473
      %v475 = vrot.slane %v383, %v474
      %v476 = vmul.f32 %v422, %v471
      %v477 = vmul.f32 %v422, %v475
      %v478 = vmul.f32 %v426, %v471
      %v479 = vmul.f32 %v426, %v475
      %v480 = vadd.f32 %v464, %v476
      %v481 = vadd.f32 %v465, %v477
      %v482 = vadd.f32 %v466, %v478
      %v483 = vadd.f32 %v467, %v479
      %v484 = vmax.f32 %v480, 0.0
      %v485 = vmax.f32 %v481, 0.0
      %v486 = vmax.f32 %v482, 0.0
      %v487 = vmax.f32 %v483, 0.0
      %s488 = scalar_lea.vmem %s262, 32
      %489 = vst [vmem:[%s488] sm:$0xff] %v484
      %490 = vst [vmem:[%s488 + $0x8] sm:$0xff] %v485
      %491 = vst [vmem:[%s488 + $0x10] sm:$0xf] %v486
      %492 = vst [vmem:[%s488 + $0x18] sm:$0xf] %v487
      %v493 = vlaneseq
      %v494 = vshrl.u32 %v493, 7
      %v495 = vsub.s32 4, %v494
      %v496 = vrot.slane %v382, %v495
      %v497 = vlaneseq
      %v498 = vshrl.u32 %v497, 7
      %v499 = vsub.s32 4, %v498
      %v500 = vrot.slane %v383, %v499
      %v501 = vmul.f32 %v387, %v496
      %v502 = vmul.f32 %v387, %v500
      %v503 = vmul.f32 %v392, %v496
      %v504 = vmul.f32 %v392, %v500
      %v505 = vadd.f32 %v409, %v501
      %v506 = vadd.f32 %v409, %v502
      %v507 = vadd.f32 %v414, %v503
      %v508 = vadd.f32 %v414, %v504
      %v509 = vlaneseq
      %v510 = vshrl.u32 %v509, 7
      %v511 = vsub.s32 5, %v510
      %v512 = vrot.slane %v382, %v511
      %v513 = vlaneseq
      %v514 = vshrl.u32 %v513, 7
      %v515 = vsub.s32 5, %v514
      %v516 = vrot.slane %v383, %v515
      %v517 = vmul.f32 %v422, %v512
      %v518 = vmul.f32 %v422, %v516
      %v519 = vmul.f32 %v426, %v512
      %v520 = vmul.f32 %v426, %v516
      %v521 = vadd.f32 %v505, %v517
      %v522 = vadd.f32 %v506, %v518
      %v523 = vadd.f32 %v507, %v519
      %v524 = vadd.f32 %v508, %v520
      %v525 = vmax.f32 %v521, 0.0
      %v526 = vmax.f32 %v522, 0.0
      %v527 = vmax.f32 %v523, 0.0
      %v528 = vmax.f32 %v524, 0.0
      %s529 = scalar_lea.vmem %s262, 64
      %530 = vst [vmem:[%s529] sm:$0xff] %v525
      %531 = vst [vmem:[%s529 + $0x8] sm:$0xff] %v526
      %532 = vst [vmem:[%s529 + $0x10] sm:$0xf] %v527
      %533 = vst [vmem:[%s529 + $0x18] sm:$0xf] %v528
      %v534 = vlaneseq
      %v535 = vshrl.u32 %v534, 7
      %v536 = vsub.s32 6, %v535
      %v537 = vrot.slane %v382, %v536
      %v538 = vlaneseq
      %v539 = vshrl.u32 %v538, 7
      %v540 = vsub.s32 6, %v539
      %v541 = vrot.slane %v383, %v540
      %v542 = vmul.f32 %v387, %v537
      %v543 = vmul.f32 %v387, %v541
      %v544 = vmul.f32 %v392, %v537
      %v545 = vmul.f32 %v392, %v541
      %v546 = vadd.f32 %v409, %v542
      %v547 = vadd.f32 %v409, %v543
      %v548 = vadd.f32 %v414, %v544
      %v549 = vadd.f32 %v414, %v545
      %v550 = vlaneseq
      %v551 = vshrl.u32 %v550, 7
      %v552 = vsub.s32 7, %v551
      %v553 = vrot.slane %v382, %v552
      %v554 = vlaneseq
      %v555 = vshrl.u32 %v554, 7
      %v556 = vsub.s32 7, %v555
      %v557 = vrot.slane %v383, %v556
      %v558 = vmul.f32 %v422, %v553
      %v559 = vmul.f32 %v422, %v557
      %v560 = vmul.f32 %v426, %v553
      %v561 = vmul.f32 %v426, %v557
      %v562 = vadd.f32 %v546, %v558
      %v563 = vadd.f32 %v547, %v559
      %v564 = vadd.f32 %v548, %v560
      %v565 = vadd.f32 %v549, %v561
      %v566 = vmax.f32 %v562, 0.0
      %v567 = vmax.f32 %v563, 0.0
      %v568 = vmax.f32 %v564, 0.0
      %v569 = vmax.f32 %v565, 0.0
      %s570 = scalar_lea.vmem %s262, 96
      %571 = vst [vmem:[%s570] sm:$0xff] %v566
      %572 = vst [vmem:[%s570 + $0x8] sm:$0xff] %v567
      %573 = vst [vmem:[%s570 + $0x10] sm:$0xf] %v568
      %574 = vst [vmem:[%s570 + $0x18] sm:$0xf] %v569
      %s575 = smul.u32 2, %s21
      %p576 = scmp.lt.s32.totalorder %s20, 1
      %s577 = scalar_select %p576, %s20, 1
      %p578 = scmp.lt.s32.totalorder %s575, 1
      %s579 = scalar_select %p578, %s575, 1
      %s580 = smul.addr %s577, 16
      %s581 = sadd.s32 %s579, %s580
      %s582 = smul.addr %s581, 8
      %s583 = scalar_lea.vmem %s5, %s582
      // Predicated region
      $region41: #{upscale_decoder_forward.1} parent=39 // pred_check
        %p584 = pneg %p160
      $region42: #{upscale_decoder_forward.1} parent=39 // pred_check_branch
        %586 = sbr.rel (%p584) target = $region44
      $region43: #{upscale_decoder_forward.1} parent=39 // pred_region
        %s587 = smul.u32 2, %s21
      $region44: #{upscale_decoder_forward.1} parent=39 // pred_fallthru
        _
    $region40: #{upscale_decoder_forward.1} parent=5 // pred_fallthru
      _
    %p588 = scmp.le.s32.totalorder 2, %s11
    // Predicated region
    $region45: #{upscale_decoder_forward.1} parent=5 // pred_check
      %p589 = pneg %p588
    $region46: #{upscale_decoder_forward.1} parent=5 // pred_check_branch
      %591 = sbr.rel (%p589) target = $region48
    $region47: #{upscale_decoder_forward.1} parent=5 // pred_region
      %s592 = ssub.s32 %s11, 2
      // Predicated region
      $region49: #{upscale_decoder_forward.1} parent=47 // pred_check
        %p593 = pneg %p166
      $region50: #{upscale_decoder_forward.1} parent=47 // pred_check_branch
        %595 = sbr.rel (%p593) target = $region52
      $region51: #{upscale_decoder_forward.1} parent=47 // pred_region
        %s596 = smul.u32 2, %s23
        %p597 = scmp.lt.s32.totalorder %s22, 1
        %s598 = scalar_select %p597, %s22, 1
        %p599 = scmp.lt.s32.totalorder %s596, 1
        %s600 = scalar_select %p599, %s596, 1
        %s601 = smul.addr %s598, 16
        %s602 = sadd.s32 %s600, %s601
        %s603 = smul.addr %s602, 8
        %s604 = scalar_lea.vmem %s5, %s603
      $region52: #{upscale_decoder_forward.1} parent=47 // pred_fallthru
        _
    $region48: #{upscale_decoder_forward.1} parent=5 // pred_fallthru
      _
  $region6: #{upscale_decoder_forward.1} parent=0 // loop_footer
    %s15 = sadd.s32 1, %s11
  $region7: #{upscale_decoder_forward.1} parent=0 // loop_footer_branch
    %10 = sbr.rel target = $region3
  $region8: #{upscale_decoder_forward.1} parent=0 // loop_exit
    _

</llo_original>
